<compile_context>
chip_gen: v7x
topology: tpu7x:2x2x1
jax: 0.10.0
libtpu: 0.0.40
codegen_flags: <defaults>
</compile_context>

<pallas_src>
import jax
import jax.numpy as jnp
from jax.experimental import pallas as pl
from jax.experimental.pallas import tpu as pltpu


def _attn_pool_kernel(a_ref, w_ref, bias_ref, b_ref, o_ref):
    # a_ref:    (TB, F)     -- batch tile of A
    # w_ref:    (F, H)      -- linear weight (transposed vs. torch layout)
    # bias_ref: (1, H)      -- linear bias
    # b_ref:    (TB, S, H)  -- batch tile of B
    # o_ref:    (TB, H)     -- dense output slab
    a = a_ref[...]                        # (TB, F)
    w = w_ref[...]                        # (F, H)
    bias = bias_ref[...]                  # (1, H)
    b = b_ref[...]                        # (TB, S, H)

    # AP = tanh(A @ W + bias)  -- one dense MXU matmul over the whole batch tile.
    ap = jnp.tanh(jnp.dot(a, w, preferred_element_type=jnp.float32) + bias)  # (TB, H)

    # scores s[b, 1, t] = sum_h AP[b, h] * B[b, t, h]
    # Batched MXU contraction (reduction inside the systolic array): no XLU
    # cross-lane reduce over H, no (TB, S, H) broadcast temporary.
    s = jnp.einsum("bkh,bsh->bks", ap[:, None, :], b,
                   preferred_element_type=jnp.float32)                       # (TB, 1, S)

    # R = exp(-s); normalize along seq.  Shift by the per-row max of (-s)
    # (value-identical after normalization, avoids exp overflow).
    neg = -s
    neg = neg - jnp.max(neg, axis=-1, keepdims=True)
    r = jnp.exp(neg)                                                          # (TB, 1, S)
    r = r * pl.reciprocal(jnp.sum(r, axis=-1, keepdims=True), approx=True)

    # Con[b, h] = sum_t R[b, t] * B[b, t, h]  -- second batched MXU contraction.
    con = jnp.einsum("bks,bsh->bkh", r, b,
                     preferred_element_type=jnp.float32)                      # (TB, 1, H)
    o_ref[...] = con[:, 0, :].astype(o_ref.dtype)


def _vmem_limits():
    """(vmem_limit_bytes, tile_budget_bytes), sized to the chip generation."""
    phys = 64 * 1024 * 1024
    try:
        info = pltpu.get_tpu_info()
        phys = int(getattr(info, "vmem_capacity_bytes", phys))
    except Exception:
        pass
    if phys >= 96 * 1024 * 1024:
        # v5e / v6e: 128 MiB physical -> large scoped limit, big B tiles.
        limit = 96 * 1024 * 1024
    else:
        # v7x: 64 MiB physical per TC -> stay well inside it.
        limit = 48 * 1024 * 1024
    # Headroom for weight residency + Mosaic internal scratch.
    return limit, int(limit * 0.75)


def _default_block_batch(batch, seq, hidden, feature, tile_budget):
    """Batch-tile size: multiple of 8, sized against the generation-aware VMEM
    budget, with an (even) multi-step grid preferred when batch >= 16."""
    if batch <= 8:
        return batch                       # block == full extent is always legal
    # Per-batch-row f32 footprint.  With the MXU-contraction formulation the
    # B tile (double-buffered by BlockSpec) dominates; in-kernel temporaries
    # (ap, s, r, con) are only O(S + H) per row.
    row_bytes = 4 * (2 * (seq * hidden + feature + hidden) + 2 * seq + 3 * hidden)
    tb = min(batch, max(8, (tile_budget // max(row_bytes, 1)) // 8 * 8))
    if batch >= 16:
        # Keep >=2 grid steps and prefer an even step count so the "parallel"
        # batch axis balances across v7x's two TensorCores.
        tb = min(tb, max(8, (batch // 2) // 8 * 8))
        cand = tb
        while cand >= 8:
            if ((batch + cand - 1) // cand) % 2 == 0:
                tb = cand
                break
            cand -= 8
    return max(8, (tb // 8) * 8)


def attentional_pooling(A, B, weight_t, bias, *, block_batch=None):
    """A: (batch, F) f32, B: (batch, S, H) f32, weight_t: (F, H), bias: (H,).

    Returns (batch, 1, H) to match the PyTorch module's output shape.
    """
    batch, feature_dim = A.shape
    _, seq, hidden_dim = B.shape
    bias2d = bias.reshape(1, hidden_dim)

    vmem_limit, tile_budget = _vmem_limits()
    tb = block_batch if block_batch is not None else _default_block_batch(
        batch, seq, hidden_dim, feature_dim, tile_budget)
    grid = ((batch + tb - 1) // tb,)

    out2d = pl.pallas_call(
        _attn_pool_kernel,
        out_shape=jax.ShapeDtypeStruct((batch, hidden_dim), jnp.float32),
        grid_spec=pltpu.PrefetchScalarGridSpec(
            num_scalar_prefetch=0,
            grid=grid,
            in_specs=[
                pl.BlockSpec((tb, feature_dim), lambda i: (i, 0)),
                # Constant block index -> weight/bias stay resident, no per-step re-DMA.
                pl.BlockSpec((feature_dim, hidden_dim), lambda i: (0, 0)),
                pl.BlockSpec((1, hidden_dim), lambda i: (0, 0)),
                pl.BlockSpec((tb, seq, hidden_dim), lambda i: (i, 0, 0)),
            ],
            out_specs=pl.BlockSpec((tb, hidden_dim), lambda i: (i, 0)),
        ),
        compiler_params=pltpu.CompilerParams(
            dimension_semantics=("parallel",),
            vmem_limit_bytes=vmem_limit,
        ),
    )(A, weight_t, bias2d, B)

    # Present the (batch, 1, H) shape the PyTorch module returns (free reshape).
    return out2d[:, None, :]


def attentional_pooling_ref(A, B, weight_t, bias):
    ap = jnp.tanh(A @ weight_t + bias)            # (batch, H)
    s = jnp.einsum("bh,bsh->bs", ap, B)           # (batch, S)
    r = jnp.exp(-s)                               # matches torch (no shift needed at ref scale)
    r = r / jnp.sum(r, axis=-1, keepdims=True)
    con = jnp.einsum("bs,bsh->bh", r, B)          # (batch, H)
    return con[:, None, :]                        # (batch, 1, H)


if __name__ == "__main__":
    batch, feature_dim, seq, hidden_dim = 2, 16, 8, 32  # gru_output_dim == hidden_dim

    key = jax.random.PRNGKey(0)
    k_a, k_b, k_w, k_bias = jax.random.split(key, 4)

    A = jax.random.normal(k_a, (batch, feature_dim), dtype=jnp.float32)
    B = jax.random.normal(k_b, (batch, seq, hidden_dim), dtype=jnp.float32)

    # Deterministic nn.Linear(feature_dim, hidden_dim) params (kaiming-uniform-ish).
    limit = 1.0 / (feature_dim ** 0.5)
    weight_t = jax.random.uniform(
        k_w, (feature_dim, hidden_dim), jnp.float32, -limit, limit)
    bias = jax.random.uniform(k_bias, (hidden_dim,), jnp.float32, -limit, limit)

    out = attentional_pooling(A, B, weight_t, bias)
    out = jax.block_until_ready(out)

    ref = attentional_pooling_ref(A, B, weight_t, bias)
    assert out.shape == (batch, 1, hidden_dim)
    # Tolerance accounts for the approx (EUP) reciprocal in the softmax normalization.
    assert jnp.allclose(out, ref, atol=5e-3, rtol=5e-3), "mismatch vs reference"

    print("KERNEL_OK")
</pallas_src>

<mosaic_0001>
module attributes {stable_mosaic.version = 11 : i64} {
  func.func @_attn_pool_kernel(%arg0: i32, %arg1: memref<2x16xf32, #tpu.memory_space<vmem>>, %arg2: memref<16x32xf32, #tpu.memory_space<vmem>>, %arg3: memref<1x32xf32, #tpu.memory_space<vmem>>, %arg4: memref<2x8x32xf32, #tpu.memory_space<vmem>>, %arg5: memref<2x32xf32, #tpu.memory_space<vmem>>) attributes {dimension_semantics = [#tpu.dimension_semantics<parallel>], iteration_bounds = array<i64: 1>, scalar_prefetch = 0 : i64, scratch_operands = 0 : i64, tpu.core_type = #tpu.core_type<tc>, window_params = [{transform_indices = @transform_0, window_bounds = array<i64: 2, 16>}, {pipeline_mode = #tpu.pipeline_mode<synchronous>, transform_indices = @transform_1, window_bounds = array<i64: 16, 32>}, {pipeline_mode = #tpu.pipeline_mode<synchronous>, transform_indices = @transform_2, window_bounds = array<i64: 1, 32>}, {transform_indices = @transform_3, window_bounds = array<i64: 2, 8, 32>}, {transform_indices = @transform_4, window_bounds = array<i64: 2, 32>}]} {
    %c0 = arith.constant 0 : index
    %c0_0 = arith.constant 0 : index
    %0 = vector.load %arg1[%c0, %c0_0] : memref<2x16xf32, #tpu.memory_space<vmem>>, vector<2x16xf32>
    %c0_1 = arith.constant 0 : index
    %c0_2 = arith.constant 0 : index
    %1 = vector.load %arg2[%c0_1, %c0_2] : memref<16x32xf32, #tpu.memory_space<vmem>>, vector<16x32xf32>
    %c0_3 = arith.constant 0 : index
    %c0_4 = arith.constant 0 : index
    %2 = vector.load %arg3[%c0_3, %c0_4] : memref<1x32xf32, #tpu.memory_space<vmem>>, vector<1x32xf32>
    %c0_5 = arith.constant 0 : index
    %c0_6 = arith.constant 0 : index
    %c0_7 = arith.constant 0 : index
    %3 = vector.load %arg4[%c0_5, %c0_6, %c0_7] : memref<2x8x32xf32, #tpu.memory_space<vmem>>, vector<2x8x32xf32>
    %cst = arith.constant dense<0.000000e+00> : vector<2x32xf32>
    %4 = tpu.matmul %0, %1, %cst {dimension_numbers = #tpu.dot_dimension_numbers<[1], [0], [0], [1], [0, 0, 1, 1], [], []>} : vector<2x16xf32>, vector<16x32xf32>, vector<2x32xf32> -> vector<2x32xf32>
    %5 = vector.broadcast %2 : vector<1x32xf32> to vector<2x32xf32>
    %6 = arith.addf %4, %5 : vector<2x32xf32>
    %7 = math.tanh %6 : vector<2x32xf32>
    %8 = vector.shape_cast %7 : vector<2x32xf32> to vector<2x1x32xf32>
    "tpu.trace_start"() <{level = 10 : i32, message = "bkh,bsh->bks"}> : () -> ()
    %cst_8 = arith.constant dense<0.000000e+00> : vector<2x1x8xf32>
    %9 = tpu.matmul %8, %3, %cst_8 {dimension_numbers = #tpu.dot_dimension_numbers<[2], [2], [1], [1], [0, 0, 0, 1, 1, 1], [0], [0]>} : vector<2x1x32xf32>, vector<2x8x32xf32>, vector<2x1x8xf32> -> vector<2x1x8xf32>
    "tpu.trace_stop"() : () -> ()
    %cst_9 = arith.constant 0.000000e+00 : f32
    %10 = vector.broadcast %cst_9 : f32 to vector<2x1x8xf32>
    %11 = arith.subf %10, %9 : vector<2x1x8xf32>
    %cst_10 = arith.constant dense<0xFF800000> : vector<2x1xf32>
    %12 = vector.multi_reduction <maximumf>, %11, %cst_10 [2] : vector<2x1x8xf32> to vector<2x1xf32>
    %13 = vector.shape_cast %12 : vector<2x1xf32> to vector<2x1x1xf32>
    %14 = vector.broadcast %13 : vector<2x1x1xf32> to vector<2x1x8xf32>
    %15 = arith.subf %11, %14 : vector<2x1x8xf32>
    %16 = math.exp %15 : vector<2x1x8xf32>
    %cst_11 = arith.constant dense<0.000000e+00> : vector<2x1xf32>
    %17 = vector.multi_reduction <add>, %16, %cst_11 [2] : vector<2x1x8xf32> to vector<2x1xf32>
    %18 = vector.shape_cast %17 : vector<2x1xf32> to vector<2x1x1xf32>
    %19 = tpu.reciprocal %18 {approx = true} : vector<2x1x1xf32> -> vector<2x1x1xf32>
    %20 = vector.broadcast %19 : vector<2x1x1xf32> to vector<2x1x8xf32>
    %21 = arith.mulf %16, %20 : vector<2x1x8xf32>
    "tpu.trace_start"() <{level = 10 : i32, message = "bks,bsh->bkh"}> : () -> ()
    %cst_12 = arith.constant dense<0.000000e+00> : vector<2x1x32xf32>
    %22 = tpu.matmul %21, %3, %cst_12 {dimension_numbers = #tpu.dot_dimension_numbers<[2], [1], [1], [2], [0, 0, 0, 1, 1, 2], [0], [0]>} : vector<2x1x8xf32>, vector<2x8x32xf32>, vector<2x1x32xf32> -> vector<2x1x32xf32>
    "tpu.trace_stop"() : () -> ()
    %23 = vector.shape_cast %22 : vector<2x1x32xf32> to vector<2x32xf32>
    %c0_13 = arith.constant 0 : index
    %c0_14 = arith.constant 0 : index
    %24 = vector.load %arg5[%c0_13, %c0_14] : memref<2x32xf32, #tpu.memory_space<vmem>>, vector<2x32xf32>
    tpu.vector_store %arg5[%c0_13, %c0_14], %23 {strides = array<i32>} : memref<2x32xf32, #tpu.memory_space<vmem>>, vector<2x32xf32>,
    return
  }
  func.func @transform_0(%arg0: i32) -> (i32, i32) {
    %c0_i32 = arith.constant 0 : i32
    %c0_i32_0 = arith.constant 0 : i32
    return %arg0, %c0_i32 : i32, i32
  }
  func.func @transform_1(%arg0: i32) -> (i32, i32) {
    %c0_i32 = arith.constant 0 : i32
    %c0_i32_0 = arith.constant 0 : i32
    %c0_i32_1 = arith.constant 0 : i32
    return %c0_i32, %c0_i32_0 : i32, i32
  }
  func.func @transform_2(%arg0: i32) -> (i32, i32) {
    %c0_i32 = arith.constant 0 : i32
    %c0_i32_0 = arith.constant 0 : i32
    %c0_i32_1 = arith.constant 0 : i32
    return %c0_i32, %c0_i32_0 : i32, i32
  }
  func.func @transform_3(%arg0: i32) -> (i32, i32, i32) {
    %c0_i32 = arith.constant 0 : i32
    %c0_i32_0 = arith.constant 0 : i32
    %c0_i32_1 = arith.constant 0 : i32
    return %arg0, %c0_i32, %c0_i32_0 : i32, i32, i32
  }
  func.func @transform_4(%arg0: i32) -> (i32, i32) {
    %c0_i32 = arith.constant 0 : i32
    %c0_i32_0 = arith.constant 0 : i32
    return %arg0, %c0_i32 : i32, i32
  }
}

</mosaic_0001>

<llo_original>
// kernel: tpu_custom_call.1
$region0: #{tpu_custom_call.1}
  #allocation0 [shape = 'u32[]', space=smem, size = 0x4, offset = 0x4, fixed_abs, tag = 'smem constant byte address 0x4 - core index']
  #allocation1 [shape = 'u32[144,128]{1,0:T(1,128)}', space=vmem, size = 0x12000, scoped, tag = 'internal scratch']
  %s0 = inlined_call_operand.hbm [shape: f32[2,16], index: 0, kind: input, shape index: {}]
  %s1 = inlined_call_operand.hbm [shape: f32[16,32], index: 1, kind: input, shape index: {}]
  %s2 = inlined_call_operand.vmem [shape: f32[1,32], index: 2, kind: input, shape index: {}]
  %s3 = inlined_call_operand.hbm [shape: f32[2,8,32], index: 3, kind: input, shape index: {}]
  %s4 = inlined_call_operand.hbm [shape: f32[2,32], index: 4, kind: output, shape index: {}]
  %s5 = sld [smem:[#allocation0]]
  $region38: #{tpu_custom_call.1} parent=0
    _
  %s7 = ssub.s32 1, %s5
  %s8 = scalar_select 0, %s7, %s5
  $region1: #{tpu_custom_call.1} parent=0
    #allocation2 [shape = 'u8[1024]{0}', space=vmem, size = 0x400, scoped, tag = 'input window, operand 0, single buffered']
    #allocation3 [shape = 's32[1]{0}', space=sflag, size = 0x4, scoped, tag = 'scoped memory for tpu_custom_call.1']
    #allocation4 [shape = 's32[1]{0}', space=sflag, size = 0x4, scoped, tag = 'scoped memory for tpu_custom_call.1']
    #allocation5 [shape = 'u8[8192]{0}', space=vmem, size = 0x2000, scoped, tag = 'input window, operand 1, single buffered']
    #allocation6 [shape = 's32[1]{0}', space=sflag, size = 0x4, scoped, tag = 'scoped memory for tpu_custom_call.1']
    #allocation7 [shape = 'u8[8192]{0}', space=vmem, size = 0x2000, scoped, tag = 'input window, operand 3, single buffered']
    #allocation8 [shape = 'u8[1024]{0}', space=vmem, size = 0x400, scoped, tag = 'output window, operand 0, single buffered']
    %9 = vsyncpa [#allocation3], 0
    %10 = vsyncpa [#allocation6], 0
    %11 = vsyncpa [#allocation4], 0
    // Predicated region
    $region2: #{tpu_custom_call.1} parent=1 // pred_check
      _
    $region3: #{tpu_custom_call.1} parent=1 // pred_check_branch
      %13 = sbr.rel (0) target = $region5
    $region4: #{tpu_custom_call.1} parent=1 // pred_region
      %s15 = ssub.s32 32, 32
      %16 = vsyncadd [#allocation3], %s15
      %s18 = sshll.u32 [#allocation2], 4
      %s19 = int_to_ptr.vmem [resolvable:$true] %s18
      %21 = dma.hbm_to_vmem [thread:$0]  %s0, 32, %s19, [#allocation3]
    $region5: #{tpu_custom_call.1} parent=1 // pred_fallthru
      _
    // Predicated region
    $region6: #{tpu_custom_call.1} parent=1 // pred_check
      _
    $region7: #{tpu_custom_call.1} parent=1 // pred_check_branch
      %23 = sbr.rel (0) target = $region9
    $region8: #{tpu_custom_call.1} parent=1 // pred_region
      %s25 = ssub.s32 256, 256
      %26 = vsyncadd [#allocation6], %s25
      %s27 = sshll.u32 [#allocation5], 4
      %s28 = int_to_ptr.vmem [resolvable:$true] %s27
      %33 = dma.hbm_to_vmem [thread:$0]  %s1, 256, %s28, [#allocation6], 128, 128, 8
    $region9: #{tpu_custom_call.1} parent=1 // pred_fallthru
      _
    // Predicated region
    $region10: #{tpu_custom_call.1} parent=1 // pred_check
      _
    $region11: #{tpu_custom_call.1} parent=1 // pred_check_branch
      %35 = sbr.rel (0) target = $region13
    $region12: #{tpu_custom_call.1} parent=1 // pred_region
      _
    $region13: #{tpu_custom_call.1} parent=1 // pred_fallthru
      _
    // Predicated region
    $region14: #{tpu_custom_call.1} parent=1 // pred_check
      _
    $region15: #{tpu_custom_call.1} parent=1 // pred_check_branch
      %37 = sbr.rel (0) target = $region17
    $region16: #{tpu_custom_call.1} parent=1 // pred_region
      %s39 = ssub.s32 256, 256
      %40 = vsyncadd [#allocation6], %s39
      %s41 = sshll.u32 [#allocation7], 4
      %s42 = int_to_ptr.vmem [resolvable:$true] %s41
      %47 = dma.hbm_to_vmem [thread:$0]  %s3, 256, %s42, [#allocation6], 128, 128, 8
    $region17: #{tpu_custom_call.1} parent=1 // pred_fallthru
      _
    // Predicated region
    $region18: #{tpu_custom_call.1} parent=1 // pred_check
      _
    $region19: #{tpu_custom_call.1} parent=1 // pred_check_branch
      %49 = sbr.rel (0) target = $region21
    $region20: #{tpu_custom_call.1} parent=1 // pred_region
      %50 = dma.done [#allocation3], 32
    $region21: #{tpu_custom_call.1} parent=1 // pred_fallthru
      _
    // Predicated region
    $region22: #{tpu_custom_call.1} parent=1 // pred_check
      _
    $region23: #{tpu_custom_call.1} parent=1 // pred_check_branch
      %52 = sbr.rel (0) target = $region25
    $region24: #{tpu_custom_call.1} parent=1 // pred_region
      %53 = dma.done [#allocation6], 256
    $region25: #{tpu_custom_call.1} parent=1 // pred_fallthru
      _
    // Predicated region
    $region26: #{tpu_custom_call.1} parent=1 // pred_check
      _
    $region27: #{tpu_custom_call.1} parent=1 // pred_check_branch
      %55 = sbr.rel (0) target = $region29
    $region28: #{tpu_custom_call.1} parent=1 // pred_region
      %56 = dma.done [#allocation6], 256
    $region29: #{tpu_custom_call.1} parent=1 // pred_fallthru
      _
    %v57 = vld [vmem:[#allocation2] sm:$0x3]
    %v58 = vld [vmem:[#allocation5] sm:$0xff]
    %v59 = vld [vmem:[#allocation5 + $0x8] sm:$0xff]
    %v60 = vld [vmem:[%s2] sm:$0x1]
    %v61 = vld [vmem:[#allocation7] sm:$0xff]
    %v62 = vld [vmem:[#allocation7 + $0x8] sm:$0xff]
    %v64 = vlaneseq
    %v65 = vshrl.u32 %v64, 7
    %v66 = vsub.s32 0, %v65
    %v67 = vrot.slane %v60, %v66
    %vm69 = vcmask 130048
    %v71 = vsel %vm69, %v57, 0
    %73 = vmatprep.subr.mxu0 0.0
    %74 = vmatpush1.msra.mxu0 %v58
    %75 = vmatprep.subr.mxu0 0.0
    %76 = vmatpush1.msra.mxu0 %v59
    %77 = vmatprep.subr.mxu0 0.0
    %78 = vmatpush1.msra.mxu0 0.0
    %79 = vmatprep.subr.mxu0 0.0
    %80 = vmatpush1.msra.mxu0 0.0
    %81 = vmatprep.subr.mxu0 0.0
    %82 = vmatpush1.msra.mxu0 0.0
    %83 = vmatprep.subr.mxu0 0.0
    %84 = vmatpush1.msra.mxu0 0.0
    %85 = vmatprep.subr.mxu0 0.0
    %86 = vmatpush1.msra.mxu0 0.0
    %87 = vmatprep.subr.mxu0 0.0
    %88 = vmatpush1.msra.mxu0 0.0
    %89 = vmatprep.subr.mxu0 0.0
    %90 = vmatpush1.msra.mxu0 0.0
    %91 = vmatprep.subr.mxu0 0.0
    %92 = vmatpush1.msra.mxu0 0.0
    %93 = vmatprep.subr.mxu0 0.0
    %94 = vmatpush1.msra.mxu0 0.0
    %95 = vmatprep.subr.mxu0 0.0
    %96 = vmatpush1.msra.mxu0 0.0
    %97 = vmatprep.subr.mxu0 0.0
    %98 = vmatpush1.msra.mxu0 0.0
    %99 = vmatprep.subr.mxu0 0.0
    %100 = vmatpush1.msra.mxu0 0.0
    %101 = vmatprep.subr.mxu0 0.0
    %102 = vmatpush1.msra.mxu0 0.0
    %103 = vmatprep.subr.mxu0 0.0
    %104 = vmatpush1.msra.mxu0 0.0
    %105 = vmatprep.subr.mxu0 0.0
    %106 = vmatpush1.msra.mxu0 0.0
    %107 = vmatprep.subr.mxu0 0.0
    %108 = vmatpush1.msra.mxu0 0.0
    %109 = vmatprep.subr.mxu0 0.0
    %110 = vmatpush1.msra.mxu0 0.0
    %111 = vmatprep.subr.mxu0 0.0
    %112 = vmatpush1.msra.mxu0 0.0
    %113 = vmatprep.subr.mxu0 0.0
    %114 = vmatpush1.msra.mxu0 0.0
    %115 = vmatprep.subr.mxu0 0.0
    %116 = vmatpush1.msra.mxu0 0.0
    %117 = vmatprep.subr.mxu0 0.0
    %118 = vmatpush1.msra.mxu0 0.0
    %119 = vmatprep.subr.mxu0 0.0
    %120 = vmatpush1.msra.mxu0 0.0
    %121 = vmatprep.subr.mxu0 0.0
    %122 = vmatpush1.msra.mxu0 0.0
    %123 = vmatprep.subr.mxu0 0.0
    %124 = vmatpush1.msra.mxu0 0.0
    %125 = vmatprep.subr.mxu0 0.0
    %126 = vmatpush1.msra.mxu0 0.0
    %127 = vmatprep.subr.mxu0 0.0
    %128 = vmatpush1.msra.mxu0 0.0
    %129 = vmatprep.subr.mxu0 0.0
    %130 = vmatpush1.msra.mxu0 0.0
    %131 = vmatprep.subr.mxu0 0.0
    %132 = vmatpush1.msra.mxu0 0.0
    %133 = vmatprep.subr.mxu0 0.0
    %134 = vmatpush1.msra.mxu0 0.0
    %135 = vmatprep.subr.mxu0 0.0
    %136 = vmatpush1.msra.mxu0 0.0
    %137 = vmatprep.mubr.f32.mxu0 0.0
    %138 = vmatmul.mubr.f32.gmra.mrb[0].mxu0 %v71
    %v139 = vpop.f32.mrb[0].mxu0
    %v140 = vadd.f32 %v67, %v139
    %v141 = vpop.f32.mrb[0].mxu0
    %142 = vdwg.mxu0
    %v143 = vtanh.pop %v140
    %v146 = vunpack.c.l.s4 1966171168
    %v147 = vunpack.c.0.s8 %v146
    %v148 = vlaneseq
    %v149 = vshrl.u32 %v148, 7
    %v150 = vsub.s32 %v147, %v149
    %v151 = vrot.slane %v143, %v150
    %v152 = vcombine.high %v151, %v151
    %v154 = vunpack.c.l.s4 1966171168
    %v155 = vunpack.c.0.s8 %v154
    %v156 = vlaneseq
    %v157 = vshrl.u32 %v156, 7
    %v158 = vsub.s32 %v155, %v157
    %v159 = vrot.slane %v151, %v158
    %v161 = vunpack.c.l.s4 1966171168
    %v162 = vunpack.c.0.s8 %v161
    %v163 = vlaneseq
    %v164 = vshrl.u32 %v163, 7
    %v165 = vsub.s32 %v162, %v164
    %v166 = vrot.slane %v152, %v165
    %vm167 = vcmask 261120
    %v168 = vsel %vm167, %v159, 0
    %v171 = vsel %vm167, %v61, 0
    %173 = vmatprep.subr.mxu0 0.0
    %174 = vmatpush1.xpose.msra.mxu0 %v171
    %175 = vmatprep.subr.mxu0 0.0
    %176 = vmatpush1.xpose.msra.mxu0 0.0
    %177 = vmatprep.subr.mxu0 0.0
    %178 = vmatpush1.xpose.msra.mxu0 0.0
    %179 = vmatprep.subr.mxu0 0.0
    %180 = vmatpush1.xpose.msra.mxu0 0.0
    %181 = vmatprep.subr.mxu0 0.0
    %182 = vmatpush1.xpose.msra.mxu0 0.0
    %183 = vmatprep.subr.mxu0 0.0
    %184 = vmatpush1.xpose.msra.mxu0 0.0
    %185 = vmatprep.subr.mxu0 0.0
    %186 = vmatpush1.xpose.msra.mxu0 0.0
    %187 = vmatprep.subr.mxu0 0.0
    %188 = vmatpush1.xpose.msra.mxu0 0.0
    %189 = vmatprep.subr.mxu0 0.0
    %190 = vmatpush1.xpose.msra.mxu0 0.0
    %191 = vmatprep.subr.mxu0 0.0
    %192 = vmatpush1.xpose.msra.mxu0 0.0
    %193 = vmatprep.subr.mxu0 0.0
    %194 = vmatpush1.xpose.msra.mxu0 0.0
    %195 = vmatprep.subr.mxu0 0.0
    %196 = vmatpush1.xpose.msra.mxu0 0.0
    %197 = vmatprep.subr.mxu0 0.0
    %198 = vmatpush1.xpose.msra.mxu0 0.0
    %199 = vmatprep.subr.mxu0 0.0
    %200 = vmatpush1.xpose.msra.mxu0 0.0
    %201 = vmatprep.subr.mxu0 0.0
    %202 = vmatpush1.xpose.msra.mxu0 0.0
    %203 = vmatprep.subr.mxu0 0.0
    %204 = vmatpush1.xpose.msra.mxu0 0.0
    %205 = vmatprep.subr.mxu0 0.0
    %206 = vmatpush1.xpose.msra.mxu0 0.0
    %207 = vmatprep.subr.mxu0 0.0
    %208 = vmatpush1.xpose.msra.mxu0 0.0
    %209 = vmatprep.subr.mxu0 0.0
    %210 = vmatpush1.xpose.msra.mxu0 0.0
    %211 = vmatprep.subr.mxu0 0.0
    %212 = vmatpush1.xpose.msra.mxu0 0.0
    %213 = vmatprep.subr.mxu0 0.0
    %214 = vmatpush1.xpose.msra.mxu0 0.0
    %215 = vmatprep.subr.mxu0 0.0
    %216 = vmatpush1.xpose.msra.mxu0 0.0
    %217 = vmatprep.subr.mxu0 0.0
    %218 = vmatpush1.xpose.msra.mxu0 0.0
    %219 = vmatprep.subr.mxu0 0.0
    %220 = vmatpush1.xpose.msra.mxu0 0.0
    %221 = vmatprep.subr.mxu0 0.0
    %222 = vmatpush1.xpose.msra.mxu0 0.0
    %223 = vmatprep.subr.mxu0 0.0
    %224 = vmatpush1.xpose.msra.mxu0 0.0
    %225 = vmatprep.subr.mxu0 0.0
    %226 = vmatpush1.xpose.msra.mxu0 0.0
    %227 = vmatprep.subr.mxu0 0.0
    %228 = vmatpush1.xpose.msra.mxu0 0.0
    %229 = vmatprep.subr.mxu0 0.0
    %230 = vmatpush1.xpose.msra.mxu0 0.0
    %231 = vmatprep.subr.mxu0 0.0
    %232 = vmatpush1.xpose.msra.mxu0 0.0
    %233 = vmatprep.subr.mxu0 0.0
    %234 = vmatpush1.xpose.msra.mxu0 0.0
    %235 = vmatprep.subr.mxu0 0.0
    %236 = vmatpush1.xpose.msra.mxu0 0.0
    %237 = vmatprep.mubr.f32.mxu0 0.0
    %238 = vmatmul.mubr.f32.gmra.mrb[0].mxu0 %v168
    %v239 = vpop.f32.mrb[0].mxu0
    %v240 = vadd.f32 0.0, %v239
    %v241 = vpop.f32.mrb[0].mxu0
    %242 = vdwg.mxu0
    %v243 = vsel %vm167, %v166, 0
    %v246 = vsel %vm167, %v62, 0
    %248 = vmatprep.subr.mxu0 0.0
    %249 = vmatpush1.xpose.msra.mxu0 %v246
    %250 = vmatprep.subr.mxu0 0.0
    %251 = vmatpush1.xpose.msra.mxu0 0.0
    %252 = vmatprep.subr.mxu0 0.0
    %253 = vmatpush1.xpose.msra.mxu0 0.0
    %254 = vmatprep.subr.mxu0 0.0
    %255 = vmatpush1.xpose.msra.mxu0 0.0
    %256 = vmatprep.subr.mxu0 0.0
    %257 = vmatpush1.xpose.msra.mxu0 0.0
    %258 = vmatprep.subr.mxu0 0.0
    %259 = vmatpush1.xpose.msra.mxu0 0.0
    %260 = vmatprep.subr.mxu0 0.0
    %261 = vmatpush1.xpose.msra.mxu0 0.0
    %262 = vmatprep.subr.mxu0 0.0
    %263 = vmatpush1.xpose.msra.mxu0 0.0
    %264 = vmatprep.subr.mxu0 0.0
    %265 = vmatpush1.xpose.msra.mxu0 0.0
    %266 = vmatprep.subr.mxu0 0.0
    %267 = vmatpush1.xpose.msra.mxu0 0.0
    %268 = vmatprep.subr.mxu0 0.0
    %269 = vmatpush1.xpose.msra.mxu0 0.0
    %270 = vmatprep.subr.mxu0 0.0
    %271 = vmatpush1.xpose.msra.mxu0 0.0
    %272 = vmatprep.subr.mxu0 0.0
    %273 = vmatpush1.xpose.msra.mxu0 0.0
    %274 = vmatprep.subr.mxu0 0.0
    %275 = vmatpush1.xpose.msra.mxu0 0.0
    %276 = vmatprep.subr.mxu0 0.0
    %277 = vmatpush1.xpose.msra.mxu0 0.0
    %278 = vmatprep.subr.mxu0 0.0
    %279 = vmatpush1.xpose.msra.mxu0 0.0
    %280 = vmatprep.subr.mxu0 0.0
    %281 = vmatpush1.xpose.msra.mxu0 0.0
    %282 = vmatprep.subr.mxu0 0.0
    %283 = vmatpush1.xpose.msra.mxu0 0.0
    %284 = vmatprep.subr.mxu0 0.0
    %285 = vmatpush1.xpose.msra.mxu0 0.0
    %286 = vmatprep.subr.mxu0 0.0
    %287 = vmatpush1.xpose.msra.mxu0 0.0
    %288 = vmatprep.subr.mxu0 0.0
    %289 = vmatpush1.xpose.msra.mxu0 0.0
    %290 = vmatprep.subr.mxu0 0.0
    %291 = vmatpush1.xpose.msra.mxu0 0.0
    %292 = vmatprep.subr.mxu0 0.0
    %293 = vmatpush1.xpose.msra.mxu0 0.0
    %294 = vmatprep.subr.mxu0 0.0
    %295 = vmatpush1.xpose.msra.mxu0 0.0
    %296 = vmatprep.subr.mxu0 0.0
    %297 = vmatpush1.xpose.msra.mxu0 0.0
    %298 = vmatprep.subr.mxu0 0.0
    %299 = vmatpush1.xpose.msra.mxu0 0.0
    %300 = vmatprep.subr.mxu0 0.0
    %301 = vmatpush1.xpose.msra.mxu0 0.0
    %302 = vmatprep.subr.mxu0 0.0
    %303 = vmatpush1.xpose.msra.mxu0 0.0
    %304 = vmatprep.subr.mxu0 0.0
    %305 = vmatpush1.xpose.msra.mxu0 0.0
    %306 = vmatprep.subr.mxu0 0.0
    %307 = vmatpush1.xpose.msra.mxu0 0.0
    %308 = vmatprep.subr.mxu0 0.0
    %309 = vmatpush1.xpose.msra.mxu0 0.0
    %310 = vmatprep.subr.mxu0 0.0
    %311 = vmatpush1.xpose.msra.mxu0 0.0
    %312 = vmatprep.mubr.f32.mxu0 0.0
    %313 = vmatmul.mubr.f32.gmra.mrb[0].mxu0 %v243
    %v314 = vpop.f32.mrb[0].mxu0
    %v315 = vadd.f32 0.0, %v314
    %v316 = vpop.f32.mrb[0].mxu0
    %317 = vdwg.mxu0
    %v318 = vsub.f32 0.0, %v240
    %v319 = vsub.f32 0.0, %v315
    %vm320 = vcmask 57344
    %v321 = vsel %vm320, %v318, -inf
    %322 = vmax.xlane.f32.xlu0 %v321
    %v323 = vpop.xlane.xlu0 %322
    %v324 = vsel %vm320, %v319, -inf
    %325 = vmax.xlane.f32.xlu0 %v324
    %v326 = vpop.xlane.xlu0 %325
    %v327 = vsub.f32 %v318, %v323
    %v328 = vsub.f32 %v319, %v326
    %v329 = vmul.f32 %v327, 1.442695
    %v330 = vpow.pop %v329
    %v331 = vmul.f32 %v328, 1.442695
    %v332 = vpow.pop %v331
    %v333 = vsel %vm320, %v330, 0.0
    %334 = vadd.xlane.f32.xlu0 %v333
    %v335 = vpop.xlane.xlu0 %334
    %v336 = vsel %vm320, %v332, 0.0
    %337 = vadd.xlane.f32.xlu0 %v336
    %v338 = vpop.xlane.xlu0 %337
    %v339 = vrcp.pop %v335
    %v340 = vrcp.pop %v338
    %v341 = vmul.f32 %v330, %v339
    %v342 = vmul.f32 %v332, %v340
    %vm343 = vcmask 64512
    %v345 = vsel %vm343, %v341, 0
    %347 = vmatprep.subr.mxu0 0.0
    %348 = vmatpush1.msra.mxu0 %v61
    %349 = vmatprep.subr.mxu0 0.0
    %350 = vmatpush1.msra.mxu0 0.0
    %351 = vmatprep.subr.mxu0 0.0
    %352 = vmatpush1.msra.mxu0 0.0
    %353 = vmatprep.subr.mxu0 0.0
    %354 = vmatpush1.msra.mxu0 0.0
    %355 = vmatprep.subr.mxu0 0.0
    %356 = vmatpush1.msra.mxu0 0.0
    %357 = vmatprep.subr.mxu0 0.0
    %358 = vmatpush1.msra.mxu0 0.0
    %359 = vmatprep.subr.mxu0 0.0
    %360 = vmatpush1.msra.mxu0 0.0
    %361 = vmatprep.subr.mxu0 0.0
    %362 = vmatpush1.msra.mxu0 0.0
    %363 = vmatprep.subr.mxu0 0.0
    %364 = vmatpush1.msra.mxu0 0.0
    %365 = vmatprep.subr.mxu0 0.0
    %366 = vmatpush1.msra.mxu0 0.0
    %367 = vmatprep.subr.mxu0 0.0
    %368 = vmatpush1.msra.mxu0 0.0
    %369 = vmatprep.subr.mxu0 0.0
    %370 = vmatpush1.msra.mxu0 0.0
    %371 = vmatprep.subr.mxu0 0.0
    %372 = vmatpush1.msra.mxu0 0.0
    %373 = vmatprep.subr.mxu0 0.0
    %374 = vmatpush1.msra.mxu0 0.0
    %375 = vmatprep.subr.mxu0 0.0
    %376 = vmatpush1.msra.mxu0 0.0
    %377 = vmatprep.subr.mxu0 0.0
    %378 = vmatpush1.msra.mxu0 0.0
    %379 = vmatprep.subr.mxu0 0.0
    %380 = vmatpush1.msra.mxu0 0.0
    %381 = vmatprep.subr.mxu0 0.0
    %382 = vmatpush1.msra.mxu0 0.0
    %383 = vmatprep.subr.mxu0 0.0
    %384 = vmatpush1.msra.mxu0 0.0
    %385 = vmatprep.subr.mxu0 0.0
    %386 = vmatpush1.msra.mxu0 0.0
    %387 = vmatprep.subr.mxu0 0.0
    %388 = vmatpush1.msra.mxu0 0.0
    %389 = vmatprep.subr.mxu0 0.0
    %390 = vmatpush1.msra.mxu0 0.0
    %391 = vmatprep.subr.mxu0 0.0
    %392 = vmatpush1.msra.mxu0 0.0
    %393 = vmatprep.subr.mxu0 0.0
    %394 = vmatpush1.msra.mxu0 0.0
    %395 = vmatprep.subr.mxu0 0.0
    %396 = vmatpush1.msra.mxu0 0.0
    %397 = vmatprep.subr.mxu0 0.0
    %398 = vmatpush1.msra.mxu0 0.0
    %399 = vmatprep.subr.mxu0 0.0
    %400 = vmatpush1.msra.mxu0 0.0
    %401 = vmatprep.subr.mxu0 0.0
    %402 = vmatpush1.msra.mxu0 0.0
    %403 = vmatprep.subr.mxu0 0.0
    %404 = vmatpush1.msra.mxu0 0.0
    %405 = vmatprep.subr.mxu0 0.0
    %406 = vmatpush1.msra.mxu0 0.0
    %407 = vmatprep.subr.mxu0 0.0
    %408 = vmatpush1.msra.mxu0 0.0
    %409 = vmatprep.subr.mxu0 0.0
    %410 = vmatpush1.msra.mxu0 0.0
    %411 = vmatprep.mubr.f32.mxu0 0.0
    %412 = vmatmul.mubr.f32.gmra.mrb[0].mxu0 %v345
    %v413 = vpop.f32.mrb[0].mxu0
    %v414 = vadd.f32 0.0, %v413
    %v415 = vpop.f32.mrb[0].mxu0
    %416 = vdwg.mxu0
    %v418 = vsel %vm343, %v342, 0
    %420 = vmatprep.subr.mxu0 0.0
    %421 = vmatpush1.msra.mxu0 %v62
    %422 = vmatprep.subr.mxu0 0.0
    %423 = vmatpush1.msra.mxu0 0.0
    %424 = vmatprep.subr.mxu0 0.0
    %425 = vmatpush1.msra.mxu0 0.0
    %426 = vmatprep.subr.mxu0 0.0
    %427 = vmatpush1.msra.mxu0 0.0
    %428 = vmatprep.subr.mxu0 0.0
    %429 = vmatpush1.msra.mxu0 0.0
    %430 = vmatprep.subr.mxu0 0.0
    %431 = vmatpush1.msra.mxu0 0.0
    %432 = vmatprep.subr.mxu0 0.0
    %433 = vmatpush1.msra.mxu0 0.0
    %434 = vmatprep.subr.mxu0 0.0
    %435 = vmatpush1.msra.mxu0 0.0
    %436 = vmatprep.subr.mxu0 0.0
    %437 = vmatpush1.msra.mxu0 0.0
    %438 = vmatprep.subr.mxu0 0.0
    %439 = vmatpush1.msra.mxu0 0.0
    %440 = vmatprep.subr.mxu0 0.0
    %441 = vmatpush1.msra.mxu0 0.0
    %442 = vmatprep.subr.mxu0 0.0
    %443 = vmatpush1.msra.mxu0 0.0
    %444 = vmatprep.subr.mxu0 0.0
    %445 = vmatpush1.msra.mxu0 0.0
    %446 = vmatprep.subr.mxu0 0.0
    %447 = vmatpush1.msra.mxu0 0.0
    %448 = vmatprep.subr.mxu0 0.0
    %449 = vmatpush1.msra.mxu0 0.0
    %450 = vmatprep.subr.mxu0 0.0
    %451 = vmatpush1.msra.mxu0 0.0
    %452 = vmatprep.subr.mxu0 0.0
    %453 = vmatpush1.msra.mxu0 0.0
    %454 = vmatprep.subr.mxu0 0.0
    %455 = vmatpush1.msra.mxu0 0.0
    %456 = vmatprep.subr.mxu0 0.0
    %457 = vmatpush1.msra.mxu0 0.0
    %458 = vmatprep.subr.mxu0 0.0
    %459 = vmatpush1.msra.mxu0 0.0
    %460 = vmatprep.subr.mxu0 0.0
    %461 = vmatpush1.msra.mxu0 0.0
    %462 = vmatprep.subr.mxu0 0.0
    %463 = vmatpush1.msra.mxu0 0.0
    %464 = vmatprep.subr.mxu0 0.0
    %465 = vmatpush1.msra.mxu0 0.0
    %466 = vmatprep.subr.mxu0 0.0
    %467 = vmatpush1.msra.mxu0 0.0
    %468 = vmatprep.subr.mxu0 0.0
    %469 = vmatpush1.msra.mxu0 0.0
    %470 = vmatprep.subr.mxu0 0.0
    %471 = vmatpush1.msra.mxu0 0.0
    %472 = vmatprep.subr.mxu0 0.0
    %473 = vmatpush1.msra.mxu0 0.0
    %474 = vmatprep.subr.mxu0 0.0
    %475 = vmatpush1.msra.mxu0 0.0
    %476 = vmatprep.subr.mxu0 0.0
    %477 = vmatpush1.msra.mxu0 0.0
    %478 = vmatprep.subr.mxu0 0.0
    %479 = vmatpush1.msra.mxu0 0.0
    %480 = vmatprep.subr.mxu0 0.0
    %481 = vmatpush1.msra.mxu0 0.0
    %482 = vmatprep.subr.mxu0 0.0
    %483 = vmatpush1.msra.mxu0 0.0
    %484 = vmatprep.mubr.f32.mxu0 0.0
    %485 = vmatmul.mubr.f32.gmra.mrb[0].mxu0 %v418
    %v486 = vpop.f32.mrb[0].mxu0
    %v487 = vadd.f32 0.0, %v486
    %v488 = vpop.f32.mrb[0].mxu0
    %489 = vdwg.mxu0
    %v492 = vrot.slane %v487, 7
    %vm493 = vcmask 1041409
    %v494 = vsel %vm493, %v492, %v414
    %vm496 = vcmask 254976
    %497 = vst.msk [vmem:[#allocation8] sm:$0x3] %vm496, %v494
    // Predicated region
    $region30: #{tpu_custom_call.1} parent=1 // pred_check
      _
    $region31: #{tpu_custom_call.1} parent=1 // pred_check_branch
      %499 = sbr.rel (0) target = $region33
    $region32: #{tpu_custom_call.1} parent=1 // pred_region
      %s501 = ssub.s32 32, 32
      %502 = vsyncadd [#allocation4], %s501
      %s504 = sshll.u32 [#allocation8], 4
      %s505 = int_to_ptr.vmem [resolvable:$true] %s504
      %507 = dma.vmem_to_hbm [thread:$0]  %s505, 32, %s4, [#allocation4]
    $region33: #{tpu_custom_call.1} parent=1 // pred_fallthru
      _
    // Predicated region
    $region34: #{tpu_custom_call.1} parent=1 // pred_check
      _
    $region35: #{tpu_custom_call.1} parent=1 // pred_check_branch
      %509 = sbr.rel (0) target = $region37
    $region36: #{tpu_custom_call.1} parent=1 // pred_region
      %510 = dma.done [#allocation4], 32
    $region37: #{tpu_custom_call.1} parent=1 // pred_fallthru
      _
    %511 = vsyncpa [#allocation3], 1
    %512 = vsyncpa [#allocation6], 1
    %513 = vsyncpa [#allocation4], 1

</llo_original>
